<compile_context>
chip_gen: v5e
topology: v5e:2x2
jax: 0.10.0
libtpu: 0.0.40
codegen_flags: <defaults>
</compile_context>

<pallas_src>
import functools

import jax
import jax.numpy as jnp
from jax import lax
from jax.experimental import pallas as pl
from jax.experimental.pallas import tpu as pltpu

LANE = 128        # lane width; E, H, V are all padded to this many lanes
ROW_ALIGN = 16    # bf16 sublane packing: keep every packed piece 16-row aligned


def _round_up(x, m):
    return -(-x // m) * m


def _packed_offsets(vocab, hidden_dim):
    """Row offsets of each piece inside the packed [n_rows, 128] bf16 weight buffer."""
    w2_off = _round_up(vocab, ROW_ALIGN)                 # fused table is rows [0, vocab)
    wfc_off = w2_off + _round_up(hidden_dim, ROW_ALIGN)
    b2_row = wfc_off + _round_up(hidden_dim, ROW_ALIGN)
    bfc_row = b2_row + ROW_ALIGN                         # each bias row 16-aligned
    n_rows = _round_up(bfc_row + 1, ROW_ALIGN)
    return w2_off, wfc_off, b2_row, bfc_row, n_rows


def _decoder_kernel(timesteps, threshold, leak, vocab, hidden_dim,
                    w2_off, wfc_off, b2_row, bfc_row,
                    tok_ref, hid_ref, w_ref, lin_ref, out_ref):
    """One independent decode step per grid index.

    tok_ref: (1, B, 1) int32   hid_ref: (1, B, 128) f32 (lanes >= H are zero)
    w_ref:   (n_rows, 128) bf16 packed weights (constant across the grid)
    lin_ref / out_ref: (1, B, 128) f32 lane-padded outputs
    """
    B = hid_ref.shape[1]

    # ---- embedding + Linear1 + b1 fused at pack time: u1 = one-hot @ fused ----
    tok = tok_ref[0]                                              # (B, 1) int32
    lane_ids = lax.broadcasted_iota(jnp.int32, (B, vocab), 1)
    onehot = (lane_ids == tok).astype(jnp.bfloat16)               # (B, vocab)
    fused = w_ref[pl.ds(0, vocab), :]                             # (vocab, 128) = table@W1+b1
    u1 = jnp.dot(onehot, fused, preferred_element_type=jnp.float32)   # (B, 128); lanes>=H are 0

    # ---- spiking recurrence: pure VPU, fully lane-dense, f32 state ----
    mem1_0 = hid_ref[0]                                           # (B, 128) f32
    ssum_0 = jnp.zeros((B, LANE), jnp.float32)

    def step(_, carry):
        mem1, ssum = carry
        mem1 = leak * mem1 + u1
        # threshold == 1.0 here -> (mem1/thr - 1 > 0) == (mem1 > thr) exactly.
        spike = (mem1 > threshold).astype(jnp.float32)            # LinearSpike.forward
        mem1 = mem1 - threshold * spike                           # soft reset
        # eval-mode dropout mask is all-ones -> identity multiply elided
        return mem1, ssum + spike

    _, spike_sum = lax.fori_loop(0, timesteps, step, (mem1_0, ssum_0), unroll=True)

    # ---- Integrate_Neuron, deferred:  sum_t(spike_t @ W2 + b2) == spike_sum @ W2 + T*b2 ----
    w2 = w_ref[pl.ds(w2_off, hidden_dim), :]                      # (H, 128) bf16
    b2 = w_ref[pl.ds(b2_row, 1), :].astype(jnp.float32)           # (1, 128)
    mem2 = jnp.dot(spike_sum[:, :hidden_dim].astype(jnp.bfloat16),  # spike counts exact in bf16
                   w2, preferred_element_type=jnp.float32) + float(timesteps) * b2

    out_ref[0] = mem2                       # division by embedding_layer.shape[1] == 1

    # ---- final fc: keep f32 state for accuracy (weights upcast in-register) ----
    wfc = w_ref[pl.ds(wfc_off, hidden_dim), :].astype(jnp.float32)   # (H, 128)
    bfc = w_ref[pl.ds(bfc_row, 1), :].astype(jnp.float32)            # (1, 128)
    lin_ref[0] = jnp.dot(mem2[:, :hidden_dim], wfc,
                         preferred_element_type=jnp.float32) + bfc


@functools.partial(jax.jit,
                   static_argnames=("vocab", "hidden_dim", "timesteps", "threshold", "leak"))
def _decode_gridded(tokens, hiddens, packed, *, vocab, hidden_dim,
                    timesteps, threshold, leak):
    """tokens [S,B] int32, hiddens [S,B,H] f32, packed [n_rows,128] bf16.
    Runs S independent SpikeOneStepDecoder forwards in ONE pallas_call (weights DMA'd once)."""
    assert threshold > 0.0, "spike compare uses (mem > thr); requires thr > 0"
    leak_c = float(min(max(float(leak), 0.0), 1.0))   # LIF.reset_mem clamps leak to [0, 1]
    assert vocab <= LANE and hidden_dim <= LANE

    S, B = tokens.shape
    w2_off, wfc_off, b2_row, bfc_row, n_rows = _packed_offsets(vocab, hidden_dim)

    tok = tokens.astype(jnp.int32)[..., None]                           # [S, B, 1]
    hid_pad = jnp.zeros((S, B, LANE), jnp.float32).at[:, :, :hidden_dim].set(
        hiddens.astype(jnp.float32))                                    # lane-dense state

    kernel = functools.partial(_decoder_kernel, int(timesteps), float(threshold),
                               leak_c, int(vocab), int(hidden_dim),
                               w2_off, wfc_off, b2_row, bfc_row)

    lin_pad, out_pad = pl.pallas_call(
        kernel,
        grid=(S,),
        out_shape=(jax.ShapeDtypeStruct((S, B, LANE), jnp.float32),     # linear, lane-padded
                   jax.ShapeDtypeStruct((S, B, LANE), jnp.float32)),    # out,    lane-padded
        in_specs=[
            pl.BlockSpec((1, B, 1), lambda s: (s, 0, 0)),               # tokens for step s
            pl.BlockSpec((1, B, LANE), lambda s: (s, 0, 0)),            # hidden for step s
            pl.BlockSpec((n_rows, LANE), lambda s: (0, 0)),             # weights: constant idx,
        ],                                                              #   DMA'd once, resident
        out_specs=(pl.BlockSpec((1, B, LANE), lambda s: (s, 0, 0)),
                   pl.BlockSpec((1, B, LANE), lambda s: (s, 0, 0))),
        compiler_params=pltpu.CompilerParams(
            dimension_semantics=("parallel",)),                         # both TCs on v7x
    )(tok, hid_pad, packed)

    return lin_pad[:, :, :vocab], out_pad[:, :, :hidden_dim]


def spike_decoder_fused(tokens, hiddens, packed, *, vocab, hidden_dim,
                        timesteps=10, threshold=1.0, leak=0.95):
    """S independent decode steps / beams fused in one call: [S,B] tokens, [S,B,H] hiddens."""
    return _decode_gridded(tokens, hiddens, packed, vocab=vocab, hidden_dim=hidden_dim,
                           timesteps=timesteps, threshold=threshold, leak=leak)


def spike_one_step_decoder(target_token, hidden, packed, *, vocab, hidden_dim,
                           timesteps=10, threshold=1.0, leak=0.95):
    """Module-equivalent call: target_token [B] int32, hidden [1,B,H] -> (linear [B,V], out [1,B,H])."""
    B = target_token.shape[0]
    lin, out = _decode_gridded(target_token.reshape(1, B),
                               hidden.reshape(1, B, hidden_dim), packed,
                               vocab=vocab, hidden_dim=hidden_dim,
                               timesteps=timesteps, threshold=threshold, leak=leak)
    return lin[0], out     # out already has the leading 1 (S == 1)


def pack_params(table, w1, b1, w2, b2, wfc, bfc):
    """Fold table@W1+b1 and pack everything, zero-padded, into one [n_rows,128] bf16 buffer.

    All padding regions are EXACTLY zero (required for lane-dense correctness)."""
    vocab, _ = table.shape
    hidden_dim = w1.shape[1]
    assert vocab <= LANE and hidden_dim <= LANE
    w2_off, wfc_off, b2_row, bfc_row, n_rows = _packed_offsets(vocab, hidden_dim)

    fused = table.astype(jnp.float32) @ w1.astype(jnp.float32) + b1.astype(jnp.float32)

    packed = jnp.zeros((n_rows, LANE), jnp.float32)
    packed = packed.at[0:vocab, 0:hidden_dim].set(fused)
    packed = packed.at[w2_off:w2_off + hidden_dim, 0:hidden_dim].set(w2)
    packed = packed.at[wfc_off:wfc_off + hidden_dim, 0:vocab].set(wfc)
    packed = packed.at[b2_row, 0:hidden_dim].set(b2)
    packed = packed.at[bfc_row, 0:vocab].set(bfc)
    return packed.astype(jnp.bfloat16)


def make_packed_params(key, vocab, emb_dim, hidden_dim):
    """Random weights ([in, out] layout, i.e. x @ W == PyTorch x @ W.T), packed."""
    ks = jax.random.split(key, 7)
    table = jax.random.normal(ks[0], (vocab, emb_dim), jnp.float32)
    w1 = jax.random.normal(ks[1], (emb_dim, hidden_dim), jnp.float32) * 0.2
    b1 = jax.random.normal(ks[2], (hidden_dim,), jnp.float32) * 0.05
    w2 = jax.random.normal(ks[3], (hidden_dim, hidden_dim), jnp.float32) * 0.2
    b2 = jax.random.normal(ks[4], (hidden_dim,), jnp.float32) * 0.05
    wfc = jax.random.normal(ks[5], (hidden_dim, vocab), jnp.float32) * 0.2
    bfc = jax.random.normal(ks[6], (vocab,), jnp.float32) * 0.05
    return pack_params(table, w1, b1, w2, b2, wfc, bfc)


def _reference(target_token, hidden, packed, *, vocab, hidden_dim,
               timesteps, threshold, leak):
    """Pure-JAX re-implementation of the PyTorch forward (original per-step op order),
    using the same (bf16-rounded) effective parameters as the kernel."""
    w2_off, wfc_off, b2_row, bfc_row, _ = _packed_offsets(vocab, hidden_dim)
    fused = packed[0:vocab, 0:hidden_dim].astype(jnp.float32)          # == table@W1 + b1
    w2 = packed[w2_off:w2_off + hidden_dim, 0:hidden_dim].astype(jnp.float32)
    wfc = packed[wfc_off:wfc_off + hidden_dim, 0:vocab].astype(jnp.float32)
    b2 = packed[b2_row, 0:hidden_dim].astype(jnp.float32)
    bfc = packed[bfc_row, 0:vocab].astype(jnp.float32)

    B = target_token.shape[0]
    leak = min(max(float(leak), 0.0), 1.0)
    u1 = fused[target_token]                       # emb @ W1 + b1, constant over timesteps
    mem1 = hidden.reshape(B, hidden_dim).astype(jnp.float32)
    mem2 = jnp.zeros((B, hidden_dim), jnp.float32)
    for _ in range(timesteps):
        mem1 = leak * mem1 + u1
        mem_thr = mem1 / threshold - 1.0
        spike = (mem_thr > 0).astype(jnp.float32)  # LinearSpike.forward
        mem1 = mem1 - threshold * spike            # soft reset
        mem2 = mem2 + spike @ w2 + b2              # Integrate_Neuron
    out = mem2 / 1.0                               # embedding_layer.shape[1] == 1
    linear = out @ wfc + bfc
    return linear, out[None]


if __name__ == "__main__":
    VOCAB, EMB_DIM, HIDDEN_DIM = 64, 16, 32
    BATCH, STEPS = 8, 4                  # 8 beams x 4 independent decode steps per call
    TIMESTEPS, THRESHOLD, LEAK = 10, 1.0, 0.95

    key = jax.random.PRNGKey(0)
    k_par, k_tok, k_hid = jax.random.split(key, 3)

    packed = make_packed_params(k_par, VOCAB, EMB_DIM, HIDDEN_DIM)
    tokens = jax.random.randint(k_tok, (STEPS, BATCH), 0, VOCAB, jnp.int32)
    hiddens = jax.random.normal(k_hid, (STEPS, BATCH, HIDDEN_DIM), jnp.float32) * 0.5

    # Fused call: STEPS independent one-step decodes, weights DMA'd once for the whole grid.
    lin_all, out_all = spike_decoder_fused(
        tokens, hiddens, packed, vocab=VOCAB, hidden_dim=HIDDEN_DIM,
        timesteps=TIMESTEPS, threshold=THRESHOLD, leak=LEAK)
    jax.block_until_ready((lin_all, out_all))
    assert lin_all.shape == (STEPS, BATCH, VOCAB)
    assert out_all.shape == (STEPS, BATCH, HIDDEN_DIM)

    # Module-equivalent single-step call (same kernel, S == 1).
    lin1, out1 = spike_one_step_decoder(
        tokens[0], hiddens[0][None], packed, vocab=VOCAB, hidden_dim=HIDDEN_DIM,
        timesteps=TIMESTEPS, threshold=THRESHOLD, leak=LEAK)
    jax.block_until_ready((lin1, out1))
    assert lin1.shape == (BATCH, VOCAB)
    assert out1.shape == (1, BATCH, HIDDEN_DIM)

    # Check against the pure-JAX reference (original PyTorch op order), step by step.
    for s in range(STEPS):
        ref_lin, ref_out = _reference(
            tokens[s], hiddens[s][None], packed, vocab=VOCAB, hidden_dim=HIDDEN_DIM,
            timesteps=TIMESTEPS, threshold=THRESHOLD, leak=LEAK)
        assert jnp.allclose(lin_all[s], ref_lin, atol=1e-3, rtol=1e-3), s
        assert jnp.allclose(out_all[s], ref_out[0], atol=1e-3, rtol=1e-3), s

    # Single-step path agrees with step 0 of the fused path.
    assert jnp.allclose(lin1, lin_all[0], atol=1e-5, rtol=1e-5)
    assert jnp.allclose(out1[0], out_all[0], atol=1e-5, rtol=1e-5)

    print("KERNEL_OK")
</pallas_src>

<mosaic_0001>
module attributes {stable_mosaic.version = 11 : i64} {
  func.func @_decoder_kernel(%arg0: i32, %arg1: memref<1x8x1xi32, #tpu.memory_space<vmem>>, %arg2: memref<1x8x128xf32, #tpu.memory_space<vmem>>, %arg3: memref<160x128xbf16, #tpu.memory_space<vmem>>, %arg4: memref<1x8x128xf32, #tpu.memory_space<vmem>>, %arg5: memref<1x8x128xf32, #tpu.memory_space<vmem>>) attributes {dimension_semantics = [#tpu.dimension_semantics<parallel>], iteration_bounds = array<i64: 4>, scalar_prefetch = 0 : i64, scratch_operands = 0 : i64, tpu.core_type = #tpu.core_type<tc>, window_params = [{transform_indices = @transform_0, window_bounds = array<i64: 1, 8, 1>}, {transform_indices = @transform_1, window_bounds = array<i64: 1, 8, 128>}, {pipeline_mode = #tpu.pipeline_mode<synchronous>, transform_indices = @transform_2, window_bounds = array<i64: 160, 128>}, {transform_indices = @transform_3, window_bounds = array<i64: 1, 8, 128>}, {transform_indices = @transform_4, window_bounds = array<i64: 1, 8, 128>}]} {
    %c0 = arith.constant 0 : index
    %c0_0 = arith.constant 0 : index
    %c0_1 = arith.constant 0 : index
    %0 = vector.load %arg1[%c0, %c0_0, %c0_1] : memref<1x8x1xi32, #tpu.memory_space<vmem>>, vector<1x8x1xi32>
    %1 = vector.shape_cast %0 : vector<1x8x1xi32> to vector<8x1xi32>
    %2 = tpu.iota {dimensions = array<i32: 1>} : vector<8x64xi32>
    %3 = vector.broadcast %1 : vector<8x1xi32> to vector<8x64xi32>
    %4 = arith.cmpi eq, %2, %3 : vector<8x64xi32>
    %5 = arith.extui %4 : vector<8x64xi1> to vector<8x64xi32>
    %6 = arith.sitofp %5 : vector<8x64xi32> to vector<8x64xf32>
    %7 = arith.truncf %6 : vector<8x64xf32> to vector<8x64xbf16>
    %c0_2 = arith.constant 0 : index
    %c0_3 = arith.constant 0 : index
    %8 = vector.load %arg3[%c0_2, %c0_3] : memref<160x128xbf16, #tpu.memory_space<vmem>>, vector<64x128xbf16>
    %cst = arith.constant dense<0.000000e+00> : vector<8x128xf32>
    %9 = tpu.matmul %7, %8, %cst {dimension_numbers = #tpu.dot_dimension_numbers<[1], [0], [0], [1], [0, 0, 1, 1], [], []>} : vector<8x64xbf16>, vector<64x128xbf16>, vector<8x128xf32> -> vector<8x128xf32>
    %c0_4 = arith.constant 0 : index
    %c0_5 = arith.constant 0 : index
    %c0_6 = arith.constant 0 : index
    %10 = vector.load %arg2[%c0_4, %c0_5, %c0_6] : memref<1x8x128xf32, #tpu.memory_space<vmem>>, vector<1x8x128xf32>
    %11 = vector.shape_cast %10 : vector<1x8x128xf32> to vector<8x128xf32>
    %cst_7 = arith.constant 0.000000e+00 : f32
    %12 = vector.broadcast %cst_7 : f32 to vector<8x128xf32>
    %c0_i32 = arith.constant 0 : i32
    %cst_8 = arith.constant 0.949999988 : f32
    %13 = vector.broadcast %cst_8 : f32 to vector<8x128xf32>
    %14 = arith.mulf %13, %11 : vector<8x128xf32>
    %15 = arith.addf %14, %9 : vector<8x128xf32>
    %cst_9 = arith.constant 1.000000e+00 : f32
    %16 = vector.broadcast %cst_9 : f32 to vector<8x128xf32>
    %17 = arith.cmpf ogt, %15, %16 : vector<8x128xf32>
    %18 = arith.extui %17 : vector<8x128xi1> to vector<8x128xi32>
    %19 = arith.sitofp %18 : vector<8x128xi32> to vector<8x128xf32>
    %cst_10 = arith.constant 1.000000e+00 : f32
    %20 = vector.broadcast %cst_10 : f32 to vector<8x128xf32>
    %21 = arith.mulf %20, %19 : vector<8x128xf32>
    %22 = arith.subf %15, %21 : vector<8x128xf32>
    %23 = arith.addf %12, %19 : vector<8x128xf32>
    %c1_i32 = arith.constant 1 : i32
    %cst_11 = arith.constant 0.949999988 : f32
    %24 = vector.broadcast %cst_11 : f32 to vector<8x128xf32>
    %25 = arith.mulf %24, %22 : vector<8x128xf32>
    %26 = arith.addf %25, %9 : vector<8x128xf32>
    %cst_12 = arith.constant 1.000000e+00 : f32
    %27 = vector.broadcast %cst_12 : f32 to vector<8x128xf32>
    %28 = arith.cmpf ogt, %26, %27 : vector<8x128xf32>
    %29 = arith.extui %28 : vector<8x128xi1> to vector<8x128xi32>
    %30 = arith.sitofp %29 : vector<8x128xi32> to vector<8x128xf32>
    %cst_13 = arith.constant 1.000000e+00 : f32
    %31 = vector.broadcast %cst_13 : f32 to vector<8x128xf32>
    %32 = arith.mulf %31, %30 : vector<8x128xf32>
    %33 = arith.subf %26, %32 : vector<8x128xf32>
    %34 = arith.addf %23, %30 : vector<8x128xf32>
    %c2_i32 = arith.constant 2 : i32
    %cst_14 = arith.constant 0.949999988 : f32
    %35 = vector.broadcast %cst_14 : f32 to vector<8x128xf32>
    %36 = arith.mulf %35, %33 : vector<8x128xf32>
    %37 = arith.addf %36, %9 : vector<8x128xf32>
    %cst_15 = arith.constant 1.000000e+00 : f32
    %38 = vector.broadcast %cst_15 : f32 to vector<8x128xf32>
    %39 = arith.cmpf ogt, %37, %38 : vector<8x128xf32>
    %40 = arith.extui %39 : vector<8x128xi1> to vector<8x128xi32>
    %41 = arith.sitofp %40 : vector<8x128xi32> to vector<8x128xf32>
    %cst_16 = arith.constant 1.000000e+00 : f32
    %42 = vector.broadcast %cst_16 : f32 to vector<8x128xf32>
    %43 = arith.mulf %42, %41 : vector<8x128xf32>
    %44 = arith.subf %37, %43 : vector<8x128xf32>
    %45 = arith.addf %34, %41 : vector<8x128xf32>
    %c3_i32 = arith.constant 3 : i32
    %cst_17 = arith.constant 0.949999988 : f32
    %46 = vector.broadcast %cst_17 : f32 to vector<8x128xf32>
    %47 = arith.mulf %46, %44 : vector<8x128xf32>
    %48 = arith.addf %47, %9 : vector<8x128xf32>
    %cst_18 = arith.constant 1.000000e+00 : f32
    %49 = vector.broadcast %cst_18 : f32 to vector<8x128xf32>
    %50 = arith.cmpf ogt, %48, %49 : vector<8x128xf32>
    %51 = arith.extui %50 : vector<8x128xi1> to vector<8x128xi32>
    %52 = arith.sitofp %51 : vector<8x128xi32> to vector<8x128xf32>
    %cst_19 = arith.constant 1.000000e+00 : f32
    %53 = vector.broadcast %cst_19 : f32 to vector<8x128xf32>
    %54 = arith.mulf %53, %52 : vector<8x128xf32>
    %55 = arith.subf %48, %54 : vector<8x128xf32>
    %56 = arith.addf %45, %52 : vector<8x128xf32>
    %c4_i32 = arith.constant 4 : i32
    %cst_20 = arith.constant 0.949999988 : f32
    %57 = vector.broadcast %cst_20 : f32 to vector<8x128xf32>
    %58 = arith.mulf %57, %55 : vector<8x128xf32>
    %59 = arith.addf %58, %9 : vector<8x128xf32>
    %cst_21 = arith.constant 1.000000e+00 : f32
    %60 = vector.broadcast %cst_21 : f32 to vector<8x128xf32>
    %61 = arith.cmpf ogt, %59, %60 : vector<8x128xf32>
    %62 = arith.extui %61 : vector<8x128xi1> to vector<8x128xi32>
    %63 = arith.sitofp %62 : vector<8x128xi32> to vector<8x128xf32>
    %cst_22 = arith.constant 1.000000e+00 : f32
    %64 = vector.broadcast %cst_22 : f32 to vector<8x128xf32>
    %65 = arith.mulf %64, %63 : vector<8x128xf32>
    %66 = arith.subf %59, %65 : vector<8x128xf32>
    %67 = arith.addf %56, %63 : vector<8x128xf32>
    %c5_i32 = arith.constant 5 : i32
    %cst_23 = arith.constant 0.949999988 : f32
    %68 = vector.broadcast %cst_23 : f32 to vector<8x128xf32>
    %69 = arith.mulf %68, %66 : vector<8x128xf32>
    %70 = arith.addf %69, %9 : vector<8x128xf32>
    %cst_24 = arith.constant 1.000000e+00 : f32
    %71 = vector.broadcast %cst_24 : f32 to vector<8x128xf32>
    %72 = arith.cmpf ogt, %70, %71 : vector<8x128xf32>
    %73 = arith.extui %72 : vector<8x128xi1> to vector<8x128xi32>
    %74 = arith.sitofp %73 : vector<8x128xi32> to vector<8x128xf32>
    %cst_25 = arith.constant 1.000000e+00 : f32
    %75 = vector.broadcast %cst_25 : f32 to vector<8x128xf32>
    %76 = arith.mulf %75, %74 : vector<8x128xf32>
    %77 = arith.subf %70, %76 : vector<8x128xf32>
    %78 = arith.addf %67, %74 : vector<8x128xf32>
    %c6_i32 = arith.constant 6 : i32
    %cst_26 = arith.constant 0.949999988 : f32
    %79 = vector.broadcast %cst_26 : f32 to vector<8x128xf32>
    %80 = arith.mulf %79, %77 : vector<8x128xf32>
    %81 = arith.addf %80, %9 : vector<8x128xf32>
    %cst_27 = arith.constant 1.000000e+00 : f32
    %82 = vector.broadcast %cst_27 : f32 to vector<8x128xf32>
    %83 = arith.cmpf ogt, %81, %82 : vector<8x128xf32>
    %84 = arith.extui %83 : vector<8x128xi1> to vector<8x128xi32>
    %85 = arith.sitofp %84 : vector<8x128xi32> to vector<8x128xf32>
    %cst_28 = arith.constant 1.000000e+00 : f32
    %86 = vector.broadcast %cst_28 : f32 to vector<8x128xf32>
    %87 = arith.mulf %86, %85 : vector<8x128xf32>
    %88 = arith.subf %81, %87 : vector<8x128xf32>
    %89 = arith.addf %78, %85 : vector<8x128xf32>
    %c7_i32 = arith.constant 7 : i32
    %cst_29 = arith.constant 0.949999988 : f32
    %90 = vector.broadcast %cst_29 : f32 to vector<8x128xf32>
    %91 = arith.mulf %90, %88 : vector<8x128xf32>
    %92 = arith.addf %91, %9 : vector<8x128xf32>
    %cst_30 = arith.constant 1.000000e+00 : f32
    %93 = vector.broadcast %cst_30 : f32 to vector<8x128xf32>
    %94 = arith.cmpf ogt, %92, %93 : vector<8x128xf32>
    %95 = arith.extui %94 : vector<8x128xi1> to vector<8x128xi32>
    %96 = arith.sitofp %95 : vector<8x128xi32> to vector<8x128xf32>
    %cst_31 = arith.constant 1.000000e+00 : f32
    %97 = vector.broadcast %cst_31 : f32 to vector<8x128xf32>
    %98 = arith.mulf %97, %96 : vector<8x128xf32>
    %99 = arith.subf %92, %98 : vector<8x128xf32>
    %100 = arith.addf %89, %96 : vector<8x128xf32>
    %c8_i32 = arith.constant 8 : i32
    %cst_32 = arith.constant 0.949999988 : f32
    %101 = vector.broadcast %cst_32 : f32 to vector<8x128xf32>
    %102 = arith.mulf %101, %99 : vector<8x128xf32>
    %103 = arith.addf %102, %9 : vector<8x128xf32>
    %cst_33 = arith.constant 1.000000e+00 : f32
    %104 = vector.broadcast %cst_33 : f32 to vector<8x128xf32>
    %105 = arith.cmpf ogt, %103, %104 : vector<8x128xf32>
    %106 = arith.extui %105 : vector<8x128xi1> to vector<8x128xi32>
    %107 = arith.sitofp %106 : vector<8x128xi32> to vector<8x128xf32>
    %cst_34 = arith.constant 1.000000e+00 : f32
    %108 = vector.broadcast %cst_34 : f32 to vector<8x128xf32>
    %109 = arith.mulf %108, %107 : vector<8x128xf32>
    %110 = arith.subf %103, %109 : vector<8x128xf32>
    %111 = arith.addf %100, %107 : vector<8x128xf32>
    %c9_i32 = arith.constant 9 : i32
    %cst_35 = arith.constant 0.949999988 : f32
    %112 = vector.broadcast %cst_35 : f32 to vector<8x128xf32>
    %113 = arith.mulf %112, %110 : vector<8x128xf32>
    %114 = arith.addf %113, %9 : vector<8x128xf32>
    %cst_36 = arith.constant 1.000000e+00 : f32
    %115 = vector.broadcast %cst_36 : f32 to vector<8x128xf32>
    %116 = arith.cmpf ogt, %114, %115 : vector<8x128xf32>
    %117 = arith.extui %116 : vector<8x128xi1> to vector<8x128xi32>
    %118 = arith.sitofp %117 : vector<8x128xi32> to vector<8x128xf32>
    %cst_37 = arith.constant 1.000000e+00 : f32
    %119 = vector.broadcast %cst_37 : f32 to vector<8x128xf32>
    %120 = arith.mulf %119, %118 : vector<8x128xf32>
    %121 = arith.subf %114, %120 : vector<8x128xf32>
    %122 = arith.addf %111, %118 : vector<8x128xf32>
    %c64 = arith.constant 64 : index
    %c0_38 = arith.constant 0 : index
    %123 = vector.load %arg3[%c64, %c0_38] : memref<160x128xbf16, #tpu.memory_space<vmem>>, vector<32x128xbf16>
    %c128 = arith.constant 128 : index
    %c0_39 = arith.constant 0 : index
    %124 = vector.load %arg3[%c128, %c0_39] : memref<160x128xbf16, #tpu.memory_space<vmem>>, vector<1x128xbf16>
    %125 = arith.extf %124 : vector<1x128xbf16> to vector<1x128xf32>
    %126 = vector.extract_strided_slice %122 {offsets = [0, 0], sizes = [8, 32], strides = [1, 1]} : vector<8x128xf32> to vector<8x32xf32>
    %127 = arith.truncf %126 : vector<8x32xf32> to vector<8x32xbf16>
    %cst_40 = arith.constant dense<0.000000e+00> : vector<8x128xf32>
    %128 = tpu.matmul %127, %123, %cst_40 {dimension_numbers = #tpu.dot_dimension_numbers<[1], [0], [0], [1], [0, 0, 1, 1], [], []>} : vector<8x32xbf16>, vector<32x128xbf16>, vector<8x128xf32> -> vector<8x128xf32>
    %cst_41 = arith.constant 1.000000e+01 : f32
    %129 = vector.broadcast %cst_41 : f32 to vector<1x128xf32>
    %130 = arith.mulf %129, %125 : vector<1x128xf32>
    %131 = vector.broadcast %130 : vector<1x128xf32> to vector<8x128xf32>
    %132 = arith.addf %128, %131 : vector<8x128xf32>
    %c0_42 = arith.constant 0 : index
    %c0_43 = arith.constant 0 : index
    %c0_44 = arith.constant 0 : index
    %133 = vector.load %arg5[%c0_42, %c0_43, %c0_44] : memref<1x8x128xf32, #tpu.memory_space<vmem>>, vector<1x8x128xf32>
    %134 = vector.shape_cast %133 : vector<1x8x128xf32> to vector<8x128xf32>
    %135 = vector.shape_cast %132 : vector<8x128xf32> to vector<1x8x128xf32>
    tpu.vector_store %arg5[%c0_42, %c0_43, %c0_44], %135 {strides = array<i32>} : memref<1x8x128xf32, #tpu.memory_space<vmem>>, vector<1x8x128xf32>,
    %c96 = arith.constant 96 : index
    %c0_45 = arith.constant 0 : index
    %136 = vector.load %arg3[%c96, %c0_45] : memref<160x128xbf16, #tpu.memory_space<vmem>>, vector<32x128xbf16>
    %137 = arith.extf %136 : vector<32x128xbf16> to vector<32x128xf32>
    %c144 = arith.constant 144 : index
    %c0_46 = arith.constant 0 : index
    %138 = vector.load %arg3[%c144, %c0_46] : memref<160x128xbf16, #tpu.memory_space<vmem>>, vector<1x128xbf16>
    %139 = arith.extf %138 : vector<1x128xbf16> to vector<1x128xf32>
    %140 = vector.extract_strided_slice %132 {offsets = [0, 0], sizes = [8, 32], strides = [1, 1]} : vector<8x128xf32> to vector<8x32xf32>
    %cst_47 = arith.constant dense<0.000000e+00> : vector<8x128xf32>
    %141 = tpu.matmul %140, %137, %cst_47 {dimension_numbers = #tpu.dot_dimension_numbers<[1], [0], [0], [1], [0, 0, 1, 1], [], []>} : vector<8x32xf32>, vector<32x128xf32>, vector<8x128xf32> -> vector<8x128xf32>
    %142 = vector.broadcast %139 : vector<1x128xf32> to vector<8x128xf32>
    %143 = arith.addf %141, %142 : vector<8x128xf32>
    %c0_48 = arith.constant 0 : index
    %c0_49 = arith.constant 0 : index
    %c0_50 = arith.constant 0 : index
    %144 = vector.load %arg4[%c0_48, %c0_49, %c0_50] : memref<1x8x128xf32, #tpu.memory_space<vmem>>, vector<1x8x128xf32>
    %145 = vector.shape_cast %144 : vector<1x8x128xf32> to vector<8x128xf32>
    %146 = vector.shape_cast %143 : vector<8x128xf32> to vector<1x8x128xf32>
    tpu.vector_store %arg4[%c0_48, %c0_49, %c0_50], %146 {strides = array<i32>} : memref<1x8x128xf32, #tpu.memory_space<vmem>>, vector<1x8x128xf32>,
    return
  }
  func.func @transform_0(%arg0: i32) -> (i32, i32, i32) {
    %c0_i32 = arith.constant 0 : i32
    %c0_i32_0 = arith.constant 0 : i32
    %c0_i32_1 = arith.constant 0 : i32
    return %arg0, %c0_i32, %c0_i32_0 : i32, i32, i32
  }
  func.func @transform_1(%arg0: i32) -> (i32, i32, i32) {
    %c0_i32 = arith.constant 0 : i32
    %c0_i32_0 = arith.constant 0 : i32
    %c0_i32_1 = arith.constant 0 : i32
    return %arg0, %c0_i32, %c0_i32_0 : i32, i32, i32
  }
  func.func @transform_2(%arg0: i32) -> (i32, i32) {
    %c0_i32 = arith.constant 0 : i32
    %c0_i32_0 = arith.constant 0 : i32
    %c0_i32_1 = arith.constant 0 : i32
    return %c0_i32, %c0_i32_0 : i32, i32
  }
  func.func @transform_3(%arg0: i32) -> (i32, i32, i32) {
    %c0_i32 = arith.constant 0 : i32
    %c0_i32_0 = arith.constant 0 : i32
    %c0_i32_1 = arith.constant 0 : i32
    return %arg0, %c0_i32, %c0_i32_0 : i32, i32, i32
  }
  func.func @transform_4(%arg0: i32) -> (i32, i32, i32) {
    %c0_i32 = arith.constant 0 : i32
    %c0_i32_0 = arith.constant 0 : i32
    %c0_i32_1 = arith.constant 0 : i32
    return %arg0, %c0_i32, %c0_i32_0 : i32, i32, i32
  }
}

</mosaic_0001>

<llo_original>
// kernel: _decode_gridded.1
$region0: #{_decode_gridded.1}
  #allocation0 [shape = 'u32[]', space=smem, size = 0x4, offset = 0x4, fixed_abs, tag = 'smem constant byte address 0x4 - core index']
  #allocation1 [shape = 'u32[72,128]{1,0:T(1,128)}', space=vmem, size = 0x9000, scoped, tag = 'internal scratch']
  %s0 = inlined_call_operand.vmem [shape: s32[4,8,1], index: 0, kind: input, shape index: {}]
  %s1 = inlined_call_operand.vmem [shape: f32[4,8,128], index: 1, kind: input, shape index: {}]
  %s2 = inlined_call_operand.hbm [shape: bf16[160,128], index: 2, kind: input, shape index: {}]
  %s3 = inlined_call_operand.hbm [shape: f32[4,8,128], index: 3, kind: output, shape index: {0}]
  %s4 = inlined_call_operand.hbm [shape: f32[4,8,128], index: 4, kind: output, shape index: {1}]
  %5 = xla_tuple %s3, %s4
  %s6 = sld [smem:[#allocation0]]
  $region57: #{_decode_gridded.1} parent=0
    _
  %s8 = ssub.s32 1, %s6
  %s9 = scalar_select 0, %s8, %s6
  $region1: #{_decode_gridded.1} parent=0
    #allocation2 [shape = 'u8[40960]{0}', space=vmem, size = 0xa000, scoped, tag = 'input window, operand 2, single buffered']
    #allocation3 [shape = 's32[2]{0}', space=sflag, size = 0x8, scoped, tag = 'scoped memory for _decode_gridded.1']
    #allocation4 [shape = 's32[2]{0}', space=sflag, size = 0x8, scoped, tag = 'scoped memory for _decode_gridded.1']
    #allocation5 [shape = 'u8[8192]{0}', space=vmem, size = 0x2000, scoped, tag = 'output window, operand 0']
    #allocation6 [shape = 'u8[8192]{0}', space=vmem, size = 0x2000, scoped, tag = 'output window, operand 1']
    #allocation7 [shape = 's32[2]{0}', space=sflag, size = 0x8, scoped, tag = 'scoped memory for _decode_gridded.1']
    %10 = vsyncpa [#allocation3], 0
    %11 = vsyncpa [#allocation4], 0
    %s12 = scalar_lea.sflag [#allocation4], 1
    %13 = vsyncpa %s12, 0
    %14 = vsyncpa [#allocation7], 0
    %s15 = scalar_lea.sflag [#allocation7], 1
    %16 = vsyncpa %s15, 0
    loop: start=0, step=1, limit=6
    $region2: #{_decode_gridded.1} parent=1 // loop_pre_header
      _
    $region3: #{_decode_gridded.1} parent=1 // loop_header
      %s18 = sphi 0, %s22
      %p19 = scmp.ge.s32.totalorder %s18, 6
      %s28 = sphi 0, %s30
      %s31 = sphi 0, %s28
      %s32 = sphi 0, %s31
      %s48 = sphi 0, %s32
      %s54 = sphi 0, %s56
      %s57 = sphi 0, %s54
      %s58 = sphi 0, %s57
      %s74 = sphi 0, %s58
      %s78 = sphi 0, %s78
      %s80 = sphi 0, %s78
      %s81 = sphi 0, %s80
      %s95 = sphi 0, %s81
      %s101 = sphi 0, %s103
      %s104 = sphi 0, %s101
      %s105 = sphi 0, %s104
      %s121 = sphi 0, %s105
      %s127 = sphi 0, %s129
      %s130 = sphi 0, %s127
      %s131 = sphi 0, %s130
      %s147 = sphi 0, %s131
    $region4: #{_decode_gridded.1} parent=1 // loop_header_branch
      %21 = sbr.rel (%p19) target = $region8
    $region5: #{_decode_gridded.1} parent=1 // loop_body
      %s23 = ssub.s32 %s18, 1
      %s24 = ssub.s32 %s18, 2
      %s25 = sadd.s32 %s18, 1
      %s26 = ssub.s32 %s18, %s25
      %p27 = scmp.eq.s32.totalorder %s26, 0
      %s29 = sadd.s32 %s28, 1
      %s30 = scalar_select %p27, %s28, %s29
      %p33 = pneg %p27
      %p34 = scmp.eq.s32.totalorder %s18, 3
      %p35 = por %p33, %p34
      %p36 = scmp.ne.s32.totalorder %s28, %s31
      %p37 = scmp.eq.s32.totalorder %s18, 0
      %p38 = por %p36, %p37
      %p39 = scmp.ne.s32.totalorder %s28, %s31
      %p40 = scmp.eq.s32.totalorder %s23, 3
      %p41 = por %p39, %p40
      %p42 = scmp.ne.s32.totalorder %s31, %s32
      %p43 = scmp.eq.s32.totalorder %s23, 0
      %p44 = por %p42, %p43
      %p45 = scmp.ne.s32.totalorder %s31, %s32
      %p46 = scmp.eq.s32.totalorder %s24, 3
      %p47 = por %p45, %p46
      %p49 = scmp.ne.s32.totalorder %s32, %s48
      %p50 = scmp.eq.s32.totalorder %s24, 0
      %p51 = por %p49, %p50
      %s52 = ssub.s32 %s18, %s25
      %p53 = scmp.eq.s32.totalorder %s52, 0
      %s55 = sadd.s32 %s54, 1
      %s56 = scalar_select %p53, %s54, %s55
      %p59 = pneg %p53
      %p60 = scmp.eq.s32.totalorder %s18, 3
      %p61 = por %p59, %p60
      %p62 = scmp.ne.s32.totalorder %s54, %s57
      %p63 = scmp.eq.s32.totalorder %s18, 0
      %p64 = por %p62, %p63
      %p65 = scmp.ne.s32.totalorder %s54, %s57
      %p66 = scmp.eq.s32.totalorder %s23, 3
      %p67 = por %p65, %p66
      %p68 = scmp.ne.s32.totalorder %s57, %s58
      %p69 = scmp.eq.s32.totalorder %s23, 0
      %p70 = por %p68, %p69
      %p71 = scmp.ne.s32.totalorder %s57, %s58
      %p72 = scmp.eq.s32.totalorder %s24, 3
      %p73 = por %p71, %p72
      %p75 = scmp.ne.s32.totalorder %s58, %s74
      %p76 = scmp.eq.s32.totalorder %s24, 0
      %p77 = por %p75, %p76
      %s79 = sadd.s32 %s78, 1
      %p82 = scmp.eq.s32.totalorder %s18, 3
      %p83 = scmp.ne.s32.totalorder %s78, %s80
      %p84 = scmp.eq.s32.totalorder %s18, 0
      %p85 = por %p83, %p84
      %p86 = scmp.ne.s32.totalorder %s78, %s80
      %p87 = scmp.eq.s32.totalorder %s23, 3
      %p88 = por %p86, %p87
      %p89 = scmp.ne.s32.totalorder %s80, %s81
      %p90 = scmp.eq.s32.totalorder %s23, 0
      %p91 = por %p89, %p90
      %p92 = scmp.ne.s32.totalorder %s80, %s81
      %p93 = scmp.eq.s32.totalorder %s24, 3
      %p94 = por %p92, %p93
      %p96 = scmp.ne.s32.totalorder %s81, %s95
      %p97 = scmp.eq.s32.totalorder %s24, 0
      %p98 = por %p96, %p97
      %s99 = ssub.s32 %s18, %s25
      %p100 = scmp.eq.s32.totalorder %s99, 0
      %s102 = sadd.s32 %s101, 1
      %s103 = scalar_select %p100, %s101, %s102
      %p106 = pneg %p100
      %p107 = scmp.eq.s32.totalorder %s18, 3
      %p108 = por %p106, %p107
      %p109 = scmp.ne.s32.totalorder %s101, %s104
      %p110 = scmp.eq.s32.totalorder %s18, 0
      %p111 = por %p109, %p110
      %p112 = scmp.ne.s32.totalorder %s101, %s104
      %p113 = scmp.eq.s32.totalorder %s23, 3
      %p114 = por %p112, %p113
      %p115 = scmp.ne.s32.totalorder %s104, %s105
      %p116 = scmp.eq.s32.totalorder %s23, 0
      %p117 = por %p115, %p116
      %p118 = scmp.ne.s32.totalorder %s104, %s105
      %p119 = scmp.eq.s32.totalorder %s24, 3
      %p120 = por %p118, %p119
      %p122 = scmp.ne.s32.totalorder %s105, %s121
      %p123 = scmp.eq.s32.totalorder %s24, 0
      %p124 = por %p122, %p123
      %s125 = ssub.s32 %s18, %s25
      %p126 = scmp.eq.s32.totalorder %s125, 0
      %s128 = sadd.s32 %s127, 1
      %s129 = scalar_select %p126, %s127, %s128
      %p132 = pneg %p126
      %p133 = scmp.eq.s32.totalorder %s18, 3
      %p134 = por %p132, %p133
      %p135 = scmp.ne.s32.totalorder %s127, %s130
      %p136 = scmp.eq.s32.totalorder %s18, 0
      %p137 = por %p135, %p136
      %p138 = scmp.ne.s32.totalorder %s127, %s130
      %p139 = scmp.eq.s32.totalorder %s23, 3
      %p140 = por %p138, %p139
      %p141 = scmp.ne.s32.totalorder %s130, %s131
      %p142 = scmp.eq.s32.totalorder %s23, 0
      %p143 = por %p141, %p142
      %p144 = scmp.ne.s32.totalorder %s130, %s131
      %p145 = scmp.eq.s32.totalorder %s24, 3
      %p146 = por %p144, %p145
      %p148 = scmp.ne.s32.totalorder %s131, %s147
      %p149 = scmp.eq.s32.totalorder %s24, 0
      %p150 = por %p148, %p149
      %p151 = scmp.le.s32.totalorder 1, %s18
      %p152 = scmp.lt.s32.totalorder %s18, 5
      %p153 = pnand %p151, %p152
      %p154 = pneg %p153
      // Predicated region
      $region9: #{_decode_gridded.1} parent=5 // pred_check
        _
      $region10: #{_decode_gridded.1} parent=5 // pred_check_branch
        %156 = sbr.rel (%p153) target = $region12
      $region11: #{_decode_gridded.1} parent=5 // pred_region
        %s157 = ssub.s32 %s18, 1
        // Predicated region
        $region13: #{_decode_gridded.1} parent=11 // pred_check
          %p158 = pneg %p91
        $region14: #{_decode_gridded.1} parent=11 // pred_check_branch
          %160 = sbr.rel (%p158) target = $region16
        $region15: #{_decode_gridded.1} parent=11 // pred_region
          %162 = vsyncadd [#allocation3], 0
          %s163 = sshll.u32 %s2, 4
          %s164 = int_to_ptr.hbm [resolvable:$true] %s163
          %s165 = sshll.u32 [#allocation2], 4
          %s166 = int_to_ptr.vmem [resolvable:$true] %s165
          %171 = dma.hbm_to_vmem [thread:$0]  %s164, 1280, %s166, [#allocation3], 64, 64, 4
        $region16: #{_decode_gridded.1} parent=11 // pred_fallthru
          _
      $region12: #{_decode_gridded.1} parent=5 // pred_fallthru
        _
      %p172 = scmp.lt.s32.totalorder %s18, 4
      // Predicated region
      $region17: #{_decode_gridded.1} parent=5 // pred_check
        %p173 = pneg %p172
      $region18: #{_decode_gridded.1} parent=5 // pred_check_branch
        %175 = sbr.rel (%p173) target = $region20
      $region19: #{_decode_gridded.1} parent=5 // pred_region
        // Predicated region
        $region21: #{_decode_gridded.1} parent=19 // pred_check
          %p176 = pneg %p38
        $region22: #{_decode_gridded.1} parent=19 // pred_check_branch
          %178 = sbr.rel (%p176) target = $region24
        $region23: #{_decode_gridded.1} parent=19 // pred_region
          %p179 = scmp.lt.s32.totalorder %s18, 3
          %s180 = scalar_select %p179, %s18, 3
          %s181 = smul.addr %s180, 8
          %s182 = scalar_lea.vmem %s0, %s181
        $region24: #{_decode_gridded.1} parent=19 // pred_fallthru
          _
        // Predicated region
        $region25: #{_decode_gridded.1} parent=19 // pred_check
          %p183 = pneg %p64
        $region26: #{_decode_gridded.1} parent=19 // pred_check_branch
          %185 = sbr.rel (%p183) target = $region28
        $region27: #{_decode_gridded.1} parent=19 // pred_region
          %p186 = scmp.lt.s32.totalorder %s18, 3
          %s187 = scalar_select %p186, %s18, 3
          %s188 = smul.addr %s187, 8
          %s189 = scalar_lea.vmem %s1, %s188
        $region28: #{_decode_gridded.1} parent=19 // pred_fallthru
          _
      $region20: #{_decode_gridded.1} parent=5 // pred_fallthru
        _
      %p190 = scmp.le.s32.totalorder 1, %s18
      %p191 = scmp.lt.s32.totalorder %s18, 5
      %p192 = pnand %p190, %p191
      %p193 = pneg %p192
      // Predicated region
      $region29: #{_decode_gridded.1} parent=5 // pred_check
        _
      $region30: #{_decode_gridded.1} parent=5 // pred_check_branch
        %195 = sbr.rel (%p192) target = $region32
      $region31: #{_decode_gridded.1} parent=5 // pred_region
        %s196 = ssub.s32 %s18, 1
        // Predicated region
        $region33: #{_decode_gridded.1} parent=31 // pred_check
          %p197 = pneg %p91
        $region34: #{_decode_gridded.1} parent=31 // pred_check_branch
          %199 = sbr.rel (%p197) target = $region36
        $region35: #{_decode_gridded.1} parent=31 // pred_region
          %201 = dma.done [#allocation3], 1280
        $region36: #{_decode_gridded.1} parent=31 // pred_fallthru
          _
        %p202 = scmp.lt.s32.totalorder %s23, 3
        %s203 = scalar_select %p202, %s23, 3
        %s204 = smul.addr %s203, 8
        %s205 = scalar_lea.vmem %s0, %s204
        %p206 = pneg %p44
        %p207 = pneg %p41
        %p208 = scmp.lt.s32.totalorder %s23, 3
        %s209 = scalar_select %p208, %s23, 3
        %s210 = smul.addr %s209, 8
        %s211 = scalar_lea.vmem %s1, %s210
        %p212 = pneg %p70
        %p213 = pneg %p67
        %p214 = pneg %p91
        %p215 = pneg %p88
        %p216 = pneg %p117
        %p217 = pneg %p114
        %s218 = sand.u32 %s104, 1
        %s219 = scalar_lea.sflag [#allocation4], %s218
        %s220 = sand.u32 %s104, 1
        %s221 = smul.addr %s220, 8
        %s222 = scalar_lea.vmem [#allocation5], %s221
        %p223 = pneg %p143
        %p224 = pneg %p140
        %s225 = sand.u32 %s130, 1
        %s226 = scalar_lea.sflag [#allocation7], %s225
        %s227 = sand.u32 %s130, 1
        %s228 = smul.addr %s227, 8
        %s229 = scalar_lea.vmem [#allocation6], %s228
        %p230 = scmp.lt.s32.totalorder %s23, 3
        %s231 = scalar_select %p230, %s23, 3
        %s232 = smul.addr %s231, 8
        %s233 = scalar_lea.vmem %s0, %s232
        %p234 = scmp.lt.s32.totalorder %s23, 3
        %s235 = scalar_select %p234, %s23, 3
        %s236 = smul.addr %s235, 8
        %s237 = scalar_lea.vmem %s1, %s236
        %v239 = vld [vmem:[%s233] sm:$0xff]
        %v240 = vlaneseq
        %v241 = vand.u32 %v240, 127
        %242 = vset.pattern.permute.xlu0 0
        %243 = vperm.xlu0 %242, %v239
        %v244 = vpop.permute.xlu0 %243
        %vm245 = vcmp.eq.s32.totalorder %v241, %v244
        %v246 = vsel %vm245, 1, 0
        %v247 = vcvt.s32.f32 %v246
        %v248 = vpack.c.bf16 %v247, %v247
        %v249 = vld [vmem:[#allocation2] sm:$0xf]
        %v250 = vld [vmem:[#allocation2 + $0x4] sm:$0xf]
        %v251 = vld [vmem:[#allocation2 + $0x8] sm:$0xf]
        %v252 = vld [vmem:[#allocation2 + $0xc] sm:$0xf]
        %v253 = vld [vmem:[#allocation2 + $0x10] sm:$0xf]
        %v254 = vld [vmem:[#allocation2 + $0x14] sm:$0xf]
        %v255 = vld [vmem:[#allocation2 + $0x18] sm:$0xf]
        %v256 = vld [vmem:[#allocation2 + $0x1c] sm:$0xf]
        %v265 = vunpack.c.l.b16 %v249
        %v266 = vunpack.c.l.b16 %v250
        %v267 = vunpack.c.l.b16 %v251
        %v268 = vunpack.c.l.b16 %v252
        %v269 = vunpack.c.l.b16 %v253
        %v270 = vunpack.c.l.b16 %v254
        %v271 = vunpack.c.l.b16 %v255
        %v272 = vunpack.c.l.b16 %v256
        %v273 = vpack.c.b16 %v266, %v265
        %v274 = vpack.c.b16 %v268, %v267
        %v275 = vpack.c.b16 %v270, %v269
        %v276 = vpack.c.b16 %v272, %v271
        %vm281 = vcmask 523264
        %v283 = vsel %vm281, %v248, 0
        %285 = vmatpush.bf16.msra.mxu0 0
        %286 = vmatpush.bf16.msra.mxu0 0
        %287 = vmatpush.bf16.msra.mxu0 0
        %288 = vmatpush.bf16.msra.mxu0 0
        %289 = vmatpush.bf16.msra.mxu0 %v276
        %290 = vmatpush.bf16.msra.mxu0 %v275
        %291 = vmatpush.bf16.msra.mxu0 %v274
        %292 = vmatpush.bf16.msra.mxu0 %v273
        %293 = vmatmul.bf16.gmra.mxu0 %v283
        %v294 = vpop.f32.mrf.mxu0
        %v295 = vadd.f32 0.0, %v294
        %v296 = vpop.f32.mrf.mxu0
        %297 = vdwg.mxu0
        %v298 = vld [vmem:[%s237] sm:$0xff]
        %v299 = vmul.f32 %v298, 0.95
        %v300 = vadd.f32 %v299, %v295
        %vm301 = vcmp.gt.f32.partialorder %v300, 1.0
        %v302 = vsel %vm301, 1, 0
        %v303 = vcvt.s32.f32 %v302
        %v304 = vsub.f32 %v300, %v303
        %v305 = vadd.f32 %v303, 0.0
        %v306 = vmul.f32 %v304, 0.95
        %v307 = vadd.f32 %v306, %v295
        %vm308 = vcmp.gt.f32.partialorder %v307, 1.0
        %v309 = vsel %vm308, 1, 0
        %v310 = vcvt.s32.f32 %v309
        %v311 = vsub.f32 %v307, %v310
        %v312 = vadd.f32 %v305, %v310
        %v313 = vmul.f32 %v311, 0.95
        %v314 = vadd.f32 %v313, %v295
        %vm315 = vcmp.gt.f32.partialorder %v314, 1.0
        %v316 = vsel %vm315, 1, 0
        %v317 = vcvt.s32.f32 %v316
        %v318 = vsub.f32 %v314, %v317
        %v319 = vadd.f32 %v312, %v317
        %v320 = vmul.f32 %v318, 0.95
        %v321 = vadd.f32 %v320, %v295
        %vm322 = vcmp.gt.f32.partialorder %v321, 1.0
        %v323 = vsel %vm322, 1, 0
        %v324 = vcvt.s32.f32 %v323
        %v325 = vsub.f32 %v321, %v324
        %v326 = vadd.f32 %v319, %v324
        %v327 = vmul.f32 %v325, 0.95
        %v328 = vadd.f32 %v327, %v295
        %vm329 = vcmp.gt.f32.partialorder %v328, 1.0
        %v330 = vsel %vm329, 1, 0
        %v331 = vcvt.s32.f32 %v330
        %v332 = vsub.f32 %v328, %v331
        %v333 = vadd.f32 %v326, %v331
        %v334 = vmul.f32 %v332, 0.95
        %v335 = vadd.f32 %v334, %v295
        %vm336 = vcmp.gt.f32.partialorder %v335, 1.0
        %v337 = vsel %vm336, 1, 0
        %v338 = vcvt.s32.f32 %v337
        %v339 = vsub.f32 %v335, %v338
        %v340 = vadd.f32 %v333, %v338
        %v341 = vmul.f32 %v339, 0.95
        %v342 = vadd.f32 %v341, %v295
        %vm343 = vcmp.gt.f32.partialorder %v342, 1.0
        %v344 = vsel %vm343, 1, 0
        %v345 = vcvt.s32.f32 %v344
        %v346 = vsub.f32 %v342, %v345
        %v347 = vadd.f32 %v340, %v345
        %v348 = vmul.f32 %v346, 0.95
        %v349 = vadd.f32 %v348, %v295
        %vm350 = vcmp.gt.f32.partialorder %v349, 1.0
        %v351 = vsel %vm350, 1, 0
        %v352 = vcvt.s32.f32 %v351
        %v353 = vsub.f32 %v349, %v352
        %v354 = vadd.f32 %v347, %v352
        %v355 = vmul.f32 %v353, 0.95
        %v356 = vadd.f32 %v355, %v295
        %vm357 = vcmp.gt.f32.partialorder %v356, 1.0
        %v358 = vsel %vm357, 1, 0
        %v359 = vcvt.s32.f32 %v358
        %v360 = vsub.f32 %v356, %v359
        %v361 = vadd.f32 %v354, %v359
        %v362 = vmul.f32 %v360, 0.95
        %v363 = vadd.f32 %v362, %v295
        %vm364 = vcmp.gt.f32.partialorder %v363, 1.0
        %v365 = vsel %vm364, 1, 0
        %v366 = vcvt.s32.f32 %v365
        %v367 = vadd.f32 %v361, %v366
        %v368 = vld [vmem:[#allocation2 + $0x20] sm:$0xf]
        %v369 = vld [vmem:[#allocation2 + $0x24] sm:$0xf]
        %v370 = vld [vmem:[#allocation2 + $0x28] sm:$0xf]
        %v371 = vld [vmem:[#allocation2 + $0x2c] sm:$0xf]
        %v372 = vld [vmem:[#allocation2 + $0x40] sm:$0x1]
        %v373 = vunpack.c.l.bf16 %v372
        %v374 = vpack.c.bf16 %v367, %v367
        %v375 = vmul.f32 %v373, 10.0
        %v376 = vperm.slane %v375, 0
        %v381 = vunpack.c.l.b16 %v368
        %v382 = vunpack.c.l.b16 %v369
        %v383 = vunpack.c.l.b16 %v370
        %v384 = vunpack.c.l.b16 %v371
        %v385 = vpack.c.b16 %v382, %v381
        %v386 = vpack.c.b16 %v384, %v383
        %vm389 = vcmask 261120
        %v391 = vsel %vm389, %v374, 0
        %393 = vmatpush.bf16.msra.mxu0 0
        %394 = vmatpush.bf16.msra.mxu0 0
        %395 = vmatpush.bf16.msra.mxu0 0
        %396 = vmatpush.bf16.msra.mxu0 0
        %397 = vmatpush.bf16.msra.mxu0 0
        %398 = vmatpush.bf16.msra.mxu0 0
        %399 = vmatpush.bf16.msra.mxu0 %v386
        %400 = vmatpush.bf16.msra.mxu0 %v385
        %401 = vmatmul.bf16.gmra.mxu0 %v391
        %v402 = vpop.f32.mrf.mxu0
        %v403 = vadd.f32 %v376, %v402
        %v404 = vpop.f32.mrf.mxu0
        %405 = vdwg.mxu0
        %406 = vst [vmem:[%s229] sm:$0xff] %v403
        %v407 = vld [vmem:[#allocation2 + $0x30] sm:$0xf]
        %v408 = vld [vmem:[#allocation2 + $0x34] sm:$0xf]
        %v409 = vld [vmem:[#allocation2 + $0x38] sm:$0xf]
        %v410 = vld [vmem:[#allocation2 + $0x3c] sm:$0xf]
        %v411 = vunpack.c.l.bf16 %v407
        %v412 = vunpack.c.l.bf16 %v408
        %v413 = vunpack.c.l.bf16 %v409
        %v414 = vunpack.c.l.bf16 %v410
        %v415 = vld [vmem:[#allocation2 + $0x48] sm:$0x1]
        %v416 = vunpack.c.l.bf16 %v415
        %v417 = vperm.slane %v416, 0
        %v419 = vsel %vm389, %v403, 0
        %421 = vmatpush.msra.mxu0 0.0
        %422 = vmatpush.msra.mxu0 0.0
        %423 = vmatpush.msra.mxu0 0.0
        %424 = vmatpush.msra.mxu0 0.0
        %425 = vmatpush.msra.mxu0 0.0
        %426 = vmatpush.msra.mxu0 0.0
        %427 = vmatpush.msra.mxu0 0.0
        %428 = vmatpush.msra.mxu0 0.0
        %429 = vmatpush.msra.mxu0 0.0
        %430 = vmatpush.msra.mxu0 0.0
        %431 = vmatpush.msra.mxu0 0.0
        %432 = vmatpush.msra.mxu0 0.0
        %433 = vmatpush.msra.mxu0 %v414
        %434 = vmatpush.msra.mxu0 %v413
        %435 = vmatpush.msra.mxu0 %v412
        %436 = vmatpush.msra.mxu0 %v411
        %437 = vmatmul.f32.gmra.mxu0 %v419
        %v438 = vpop.f32.mrf.mxu0
        %v439 = vadd.f32 %v417, %v438
        %440 = vdwg.mxu0
        %441 = vst [vmem:[%s222] sm:$0xff] %v439
        %s442 = sand.u32 %s104, 1
        %s443 = scalar_lea.sflag [#allocation4], %s442
        %s444 = sand.u32 %s104, 1
        %s445 = smul.addr %s444, 8
        %s446 = scalar_lea.vmem [#allocation5], %s445
        %s447 = sand.u32 %s130, 1
        %s448 = scalar_lea.sflag [#allocation7], %s447
        %s449 = sand.u32 %s130, 1
        %s450 = smul.addr %s449, 8
        %s451 = scalar_lea.vmem [#allocation6], %s450
        // Predicated region
        $region37: #{_decode_gridded.1} parent=31 // pred_check
          %p452 = pneg %p114
        $region38: #{_decode_gridded.1} parent=31 // pred_check_branch
          %454 = sbr.rel (%p452) target = $region40
        $region39: #{_decode_gridded.1} parent=31 // pred_region
          %456 = vsyncadd %s443, 0
          %s457 = smul.addr %s23, 8
          %s458 = scalar_lea.hbm %s3, %s457
          %s460 = sshll.u32 %s446, 4
          %s461 = int_to_ptr.vmem [resolvable:$true] %s460
          %s462 = sshll.u32 %s458, 4
          %s463 = int_to_ptr.hbm [resolvable:$true] %s462
          %465 = dma.vmem_to_hbm [thread:$0]  %s461, 128, %s463, %s443
        $region40: #{_decode_gridded.1} parent=31 // pred_fallthru
          _
        // Predicated region
        $region41: #{_decode_gridded.1} parent=31 // pred_check
          %p466 = pneg %p140
        $region42: #{_decode_gridded.1} parent=31 // pred_check_branch
          %468 = sbr.rel (%p466) target = $region44
        $region43: #{_decode_gridded.1} parent=31 // pred_region
          %470 = vsyncadd %s448, 0
          %s471 = smul.addr %s23, 8
          %s472 = scalar_lea.hbm %s4, %s471
          %s474 = sshll.u32 %s451, 4
          %s475 = int_to_ptr.vmem [resolvable:$true] %s474
          %s476 = sshll.u32 %s472, 4
          %s477 = int_to_ptr.hbm [resolvable:$true] %s476
          %479 = dma.vmem_to_hbm [thread:$0]  %s475, 128, %s477, %s448
        $region44: #{_decode_gridded.1} parent=31 // pred_fallthru
          _
      $region32: #{_decode_gridded.1} parent=5 // pred_fallthru
        _
      %p480 = scmp.le.s32.totalorder 2, %s18
      // Predicated region
      $region45: #{_decode_gridded.1} parent=5 // pred_check
        %p481 = pneg %p480
      $region46: #{_decode_gridded.1} parent=5 // pred_check_branch
        %483 = sbr.rel (%p481) target = $region48
      $region47: #{_decode_gridded.1} parent=5 // pred_region
        %s484 = ssub.s32 %s18, 2
        // Predicated region
        $region49: #{_decode_gridded.1} parent=47 // pred_check
          %p485 = pneg %p120
        $region50: #{_decode_gridded.1} parent=47 // pred_check_branch
          %487 = sbr.rel (%p485) target = $region52
        $region51: #{_decode_gridded.1} parent=47 // pred_region
          %s488 = sand.u32 %s105, 1
          %s489 = scalar_lea.sflag [#allocation4], %s488
          %s490 = sand.u32 %s105, 1
          %s491 = smul.addr %s490, 8
          %s492 = scalar_lea.vmem [#allocation5], %s491
          %494 = dma.done %s489, 128
        $region52: #{_decode_gridded.1} parent=47 // pred_fallthru
          _
        // Predicated region
        $region53: #{_decode_gridded.1} parent=47 // pred_check
          %p495 = pneg %p146
        $region54: #{_decode_gridded.1} parent=47 // pred_check_branch
          %497 = sbr.rel (%p495) target = $region56
        $region55: #{_decode_gridded.1} parent=47 // pred_region
          %s498 = sand.u32 %s131, 1
          %s499 = scalar_lea.sflag [#allocation7], %s498
          %s500 = sand.u32 %s131, 1
          %s501 = smul.addr %s500, 8
          %s502 = scalar_lea.vmem [#allocation6], %s501
          %504 = dma.done %s499, 128
        $region56: #{_decode_gridded.1} parent=47 // pred_fallthru
          _
      $region48: #{_decode_gridded.1} parent=5 // pred_fallthru
        _
    $region6: #{_decode_gridded.1} parent=1 // loop_footer
      %s22 = sadd.s32 1, %s18
    $region7: #{_decode_gridded.1} parent=1 // loop_footer_branch
      %17 = sbr.rel target = $region3
    $region8: #{_decode_gridded.1} parent=1 // loop_exit
      _
    %505 = vsyncpa [#allocation3], 1
    %s506 = scalar_lea.sflag [#allocation3], 1
    %507 = vsyncpa %s506, 1
    %508 = vsyncpa [#allocation4], 1
    %s509 = scalar_lea.sflag [#allocation4], 1
    %510 = vsyncpa %s509, 1
    %511 = vsyncpa [#allocation7], 1
    %s512 = scalar_lea.sflag [#allocation7], 1
    %513 = vsyncpa %s512, 1

</llo_original>
